<compile_context>
chip_gen: v7x
topology: tpu7x:2x2x1
jax: 0.10.0
libtpu: 0.0.40
codegen_flags: <defaults>
</compile_context>

<pallas_src>
import functools

import jax
import jax.numpy as jnp
from jax.experimental import pallas as pl
from jax.experimental.pallas import tpu as pltpu

# ---- problem sizes ----
STATE_DIM = 16          # base input
TASK_DIM = 8            # task_input
BASE_HIDDEN = 32        # base MLP hidden / base.output_shape
REPR_DIM = 32           # representation_shape
TASK_HIDDEN = 32        # append_hidden_shapes_task = [32]
EMBED_DIM = 32          # embedding_shape
ACT_HIDDEN = 32         # append_hidden_shapes_action = [32]
OUTPUT_DIM = 4          # output_shape

H = BASE_HIDDEN                 # 32
FW = 2 * H                      # 64  (fused lane width)

# f32 weight-slab row offsets (all multiples of 8 -> sublane-aligned static ref slices)
_W1X_OFF = 0                        # (16, 64)  [bw0 | 0]
_W1T_OFF = _W1X_OFF + STATE_DIM     # 16 : (8, 64)  [0 | tw0]
_W2_OFF = _W1T_OFF + TASK_DIM       # 24 : (64, 64) blockdiag(bw1, ew@aw_emb)
_W3_OFF = _W2_OFF + FW              # 88 : (64, 64) [[rw@aw_rep],[I32]] | 0
_W4_OFF = _W3_OFF + FW              # 152: (64, 64) [[lw],[0]] | 0
W_ROWS = _W4_OFF + FW               # 216
B_ROWS = 8                          # bias slab rows (padded to one full sublane tile)
NEG_BIG = -3.0e38                   # "no ReLU" lower bound for the second half of layer 2
MAX_TILE = 8192                     # keeps per-step VMEM well under v7x's 64 MiB


def embedding_net_kernel(x_ref, t_ref, w_ref, b_ref, o_ref):
    f32 = jnp.float32
    bf16 = jnp.bfloat16

    # MXU operands in bf16 (native on v5e/v6e/v7x), f32 accumulation; all elementwise
    # (bias add / ReLU / clamp) stays f32 since the v5e VPU has no bf16 path.
    x = x_ref[...].astype(bf16)                          # (TB, 16)
    t = t_ref[...].astype(bf16)                          # (TB, 8)

    w1x = w_ref[_W1X_OFF:_W1T_OFF, :].astype(bf16)       # (16, 64) [bw0 | 0]
    w1t = w_ref[_W1T_OFF:_W2_OFF, :].astype(bf16)        # (8, 64)  [0 | tw0]
    w2 = w_ref[_W2_OFF:_W3_OFF, :].astype(bf16)          # (64, 64) blockdiag(bw1, ew@aw_emb)
    w3 = w_ref[_W3_OFF:_W4_OFF, :].astype(bf16)          # (64, 64) [[rw@aw_rep],[I]] | 0
    w4 = w_ref[_W4_OFF:W_ROWS, :].astype(bf16)           # (64, 64) [[lw],[0]] | 0

    b = b_ref[...]                                       # (8, 64) f32
    b1 = b[0:1, :]                                       # [bb0 | tb0]
    b2 = b[1:2, :]                                       # [bb1 | folded action bias]
    b4 = b[2:3, :]                                       # [lb | 0]
    lower = b[3:4, :]                                    # [0]*32 + [-BIG]*32

    # layer 1: both branches as two half dots (zero blocks place each branch in its
    # own 32-lane half -- no concat needed), ReLU everywhere.
    z1 = jnp.maximum(
        jnp.dot(x, w1x, preferred_element_type=f32)
        + jnp.dot(t, w1t, preferred_element_type=f32) + b1, 0.0)
    # layer 2: ReLU only on the base half (cols 0:32); task/embedding half passes through.
    z2 = jnp.dot(z1.astype(bf16), w2, preferred_element_type=f32) + b2
    m = jnp.maximum(z2, lower)
    # layer 3: folded action layer (h2 @ (rw@aw_rep) + pass-through of cols 32:64), ReLU.
    a = jnp.maximum(jnp.dot(m.astype(bf16), w3, preferred_element_type=f32), 0.0)
    # layer 4: last linear; only cols 0:OUTPUT_DIM are real -> store the narrow output.
    z4 = jnp.dot(a.astype(bf16), w4, preferred_element_type=f32)
    o_ref[...] = z4[:, :OUTPUT_DIM] + b4[:, :OUTPUT_DIM]


def _round_up(x, m):
    return (x + m - 1) // m * m


def _cdiv(a, b):
    return (a + b - 1) // b


@functools.partial(jax.jit, static_argnames=("block_batch",))
def embedding_net_forward(x, task_input, fused_params, *, block_batch=2048):
    wslab, bslab = fused_params
    B = x.shape[0]
    xf = x.astype(jnp.float32)
    tf = task_input.astype(jnp.float32)

    # Pad the batch only to a multiple of 8 sublanes (never to a whole tile).  The last
    # grid block may be ragged; Pallas masks out-of-bounds reads / drops OOB writes.
    Bp = _round_up(max(B, 1), 8)
    if Bp != B:
        xf = jnp.pad(xf, ((0, Bp - B), (0, 0)))
        tf = jnp.pad(tf, ((0, Bp - B), (0, 0)))

    target = min(_round_up(max(int(block_batch), 8), 8), MAX_TILE)
    if Bp >= 16:
        # Guarantee >= 2 grid steps so the "parallel" batch axis can shard across both
        # v7x TensorCores (no cost on single-TC v5e/v6e).
        TB = min(target, _round_up(_cdiv(Bp, 2), 8))
    else:
        TB = Bp
    grid = (_cdiv(Bp, TB),)

    out = pl.pallas_call(
        embedding_net_kernel,
        out_shape=jax.ShapeDtypeStruct((Bp, OUTPUT_DIM), jnp.float32),
        grid_spec=pltpu.PrefetchScalarGridSpec(
            num_scalar_prefetch=0,
            grid=grid,
            in_specs=[
                pl.BlockSpec((TB, STATE_DIM), lambda i: (i, 0)),
                pl.BlockSpec((TB, TASK_DIM), lambda i: (i, 0)),
                pl.BlockSpec((W_ROWS, FW), lambda i: (0, 0)),
                pl.BlockSpec((B_ROWS, FW), lambda i: (0, 0)),
            ],
            out_specs=pl.BlockSpec((TB, OUTPUT_DIM), lambda i: (i, 0)),
        ),
        compiler_params=pltpu.CompilerParams(
            dimension_semantics=("parallel",)),
    )(xf, tf, wslab, bslab)

    # save_embed=False  =>  (out, None)
    return (out if Bp == B else out[:B]), None


# ---------------- parameter construction (PyTorch-style init) ----------------
def _linear_init(key, fan_in, fan_out):
    kw, kb = jax.random.split(key)
    bound = 1.0 / jnp.sqrt(jnp.float32(fan_in))
    w = jax.random.uniform(kw, (fan_in, fan_out), jnp.float32, -bound, bound)
    b = jax.random.uniform(kb, (1, fan_out), jnp.float32, -bound, bound)
    return w, b


def _last_init(key, fan_in, fan_out, scale=3e-3):
    kw, kb = jax.random.split(key)
    w = jax.random.uniform(kw, (fan_in, fan_out), jnp.float32, -scale, scale)
    b = jax.random.uniform(kb, (1, fan_out), jnp.float32, -scale, scale)
    return w, b


def make_raw_params(seed=0):
    keys = jax.random.split(jax.random.PRNGKey(seed), 7)
    bw0, bb0 = _linear_init(keys[0], STATE_DIM, BASE_HIDDEN)
    bw1, bb1 = _linear_init(keys[1], BASE_HIDDEN, BASE_HIDDEN)
    rw, rb = _linear_init(keys[2], BASE_HIDDEN, REPR_DIM)
    tw0, tb0 = _linear_init(keys[3], TASK_DIM, TASK_HIDDEN)
    ew, eb = _linear_init(keys[4], TASK_HIDDEN, EMBED_DIM)
    aw, ab = _linear_init(keys[5], REPR_DIM + EMBED_DIM, ACT_HIDDEN)
    lw, lb = _last_init(keys[6], ACT_HIDDEN, OUTPUT_DIM)
    return (bw0, bb0, bw1, bb1, rw, rb, tw0, tb0, ew, eb, aw, ab, lw, lb)


def fuse_params(raw):
    """Fold activation-free linears + block-diagonal fuse, pack into two VMEM slabs."""
    (bw0, bb0, bw1, bb1, rw, rb, tw0, tb0, ew, eb, aw, ab, lw, lb) = raw
    f32 = jnp.float32
    aw_rep = aw[:REPR_DIM]                # (32, 32)
    aw_emb = aw[REPR_DIM:]                # (32, 32)
    w_ra = rw @ aw_rep                    # representation folded into action layer
    w_ea = ew @ aw_emb                    # embedding folded into action layer
    b_a = rb @ aw_rep + eb @ aw_emb + ab  # (1, 32) combined action-layer bias

    # layer 1: blockdiag(bw0, tw0) -> rows 0:16 are [bw0 | 0], rows 16:24 are [0 | tw0]
    w1 = jnp.zeros((STATE_DIM + TASK_DIM, FW), f32)
    w1 = w1.at[:STATE_DIM, :H].set(bw0).at[STATE_DIM:, H:].set(tw0)
    b1 = jnp.concatenate([bb0, tb0], axis=-1)

    # layer 2: blockdiag(bw1, w_ea); action bias folded into the non-ReLU half
    w2 = jnp.zeros((FW, FW), f32)
    w2 = w2.at[:H, :H].set(bw1).at[H:, H:].set(w_ea)
    b2 = jnp.concatenate([bb1, b_a], axis=-1)

    # layer 3: [[w_ra],[I]] padded to 64 output cols
    w3 = jnp.zeros((FW, FW), f32)
    w3 = w3.at[:H, :H].set(w_ra).at[H:, :H].set(jnp.eye(H, dtype=f32))

    # layer 4: [[lw],[0]] padded to 64 output cols (only cols 0:OUTPUT_DIM are nonzero)
    w4 = jnp.zeros((FW, FW), f32).at[:H, :OUTPUT_DIM].set(lw)
    b4 = jnp.zeros((1, FW), f32).at[:, :OUTPUT_DIM].set(lb)

    lower = jnp.concatenate(
        [jnp.zeros((1, H), f32), jnp.full((1, H), NEG_BIG, f32)], axis=-1)

    wslab = jnp.concatenate([w1, w2, w3, w4], axis=0)          # (216, 64)
    bslab = jnp.concatenate(
        [b1, b2, b4, lower, jnp.zeros((B_ROWS - 4, FW), f32)], axis=0)  # (8, 64)
    return wslab, bslab


def reference_forward(x, task_input, raw):
    """Unfused f32 reference matching the PyTorch forward."""
    (bw0, bb0, bw1, bb1, rw, rb, tw0, tb0, ew, eb, aw, ab, lw, lb) = raw
    h = jnp.maximum(x @ bw0 + bb0, 0.0)
    h = jnp.maximum(h @ bw1 + bb1, 0.0)
    rep = h @ rw + rb
    t = jnp.maximum(task_input @ tw0 + tb0, 0.0)
    emb = t @ ew + eb
    cat = jnp.concatenate([rep, emb], axis=-1)
    a = jnp.maximum(cat @ aw + ab, 0.0)
    return a @ lw + lb


if __name__ == "__main__":
    raw = make_raw_params(seed=0)
    fused = fuse_params(raw)

    key = jax.random.PRNGKey(0)
    kx, kt = jax.random.split(key)
    BATCH = 16
    x = jax.random.normal(kx, (BATCH, STATE_DIM), jnp.float32)
    task_input = jax.random.normal(kt, (BATCH, TASK_DIM), jnp.float32)

    # bf16 MXU operands with f32 accumulation -> relaxed tolerance vs the f32 reference
    ATOL, RTOL = 5e-3, 5e-2

    # (1) multi-step batch grid (TB=8, grid=(2,)) -- exercises the "parallel" axis path
    out, embed = embedding_net_forward(x, task_input, fused, block_batch=8)
    out = jax.block_until_ready(out)
    ref = reference_forward(x, task_input, raw)
    assert out.shape == (BATCH, OUTPUT_DIM)
    assert embed is None
    assert jnp.allclose(out, ref, atol=ATOL, rtol=RTOL), "mismatch vs reference (batched)"

    # (2) small padded batch (batch=2 -> padded to 8 rows, grid=(1,))
    x2, t2 = x[:2], task_input[:2]
    out2, _ = embedding_net_forward(x2, t2, fused)
    out2 = jax.block_until_ready(out2)
    ref2 = reference_forward(x2, t2, raw)
    assert out2.shape == (2, OUTPUT_DIM)
    assert jnp.allclose(out2, ref2, atol=ATOL, rtol=RTOL), "mismatch vs reference (batch=2)"

    # (3) ragged last block (batch=20 -> pad to 24, TB=16, grid=(2,), second block half-valid)
    kx3, kt3 = jax.random.split(jax.random.PRNGKey(1))
    x3 = jax.random.normal(kx3, (20, STATE_DIM), jnp.float32)
    t3 = jax.random.normal(kt3, (20, TASK_DIM), jnp.float32)
    out3, _ = embedding_net_forward(x3, t3, fused, block_batch=16)
    out3 = jax.block_until_ready(out3)
    ref3 = reference_forward(x3, t3, raw)
    assert out3.shape == (20, OUTPUT_DIM)
    assert jnp.allclose(out3, ref3, atol=ATOL, rtol=RTOL), "mismatch vs reference (ragged)"

    print("KERNEL_OK")
</pallas_src>

<mosaic_0001>
module attributes {stable_mosaic.version = 11 : i64} {
  func.func @embedding_net_kernel(%arg0: i32, %arg1: memref<8x16xf32, #tpu.memory_space<vmem>>, %arg2: memref<8x8xf32, #tpu.memory_space<vmem>>, %arg3: memref<216x64xf32, #tpu.memory_space<vmem>>, %arg4: memref<8x64xf32, #tpu.memory_space<vmem>>, %arg5: memref<8x4xf32, #tpu.memory_space<vmem>>) attributes {dimension_semantics = [#tpu.dimension_semantics<parallel>], iteration_bounds = array<i64: 2>, scalar_prefetch = 0 : i64, scratch_operands = 0 : i64, tpu.core_type = #tpu.core_type<tc>, window_params = [{transform_indices = @transform_0, window_bounds = array<i64: 8, 16>}, {transform_indices = @transform_1, window_bounds = array<i64: 8, 8>}, {pipeline_mode = #tpu.pipeline_mode<synchronous>, transform_indices = @transform_2, window_bounds = array<i64: 216, 64>}, {pipeline_mode = #tpu.pipeline_mode<synchronous>, transform_indices = @transform_3, window_bounds = array<i64: 8, 64>}, {transform_indices = @transform_4, window_bounds = array<i64: 8, 4>}]} {
    %c0 = arith.constant 0 : index
    %c0_0 = arith.constant 0 : index
    %0 = vector.load %arg1[%c0, %c0_0] : memref<8x16xf32, #tpu.memory_space<vmem>>, vector<8x16xf32>
    %1 = arith.truncf %0 : vector<8x16xf32> to vector<8x16xbf16>
    %c0_1 = arith.constant 0 : index
    %c0_2 = arith.constant 0 : index
    %2 = vector.load %arg2[%c0_1, %c0_2] : memref<8x8xf32, #tpu.memory_space<vmem>>, vector<8x8xf32>
    %3 = arith.truncf %2 : vector<8x8xf32> to vector<8x8xbf16>
    %c0_3 = arith.constant 0 : index
    %c0_4 = arith.constant 0 : index
    %4 = vector.load %arg3[%c0_3, %c0_4] : memref<216x64xf32, #tpu.memory_space<vmem>>, vector<16x64xf32>
    %5 = arith.truncf %4 : vector<16x64xf32> to vector<16x64xbf16>
    %c16 = arith.constant 16 : index
    %c0_5 = arith.constant 0 : index
    %6 = vector.load %arg3[%c16, %c0_5] : memref<216x64xf32, #tpu.memory_space<vmem>>, vector<8x64xf32>
    %7 = arith.truncf %6 : vector<8x64xf32> to vector<8x64xbf16>
    %c24 = arith.constant 24 : index
    %c0_6 = arith.constant 0 : index
    %8 = vector.load %arg3[%c24, %c0_6] : memref<216x64xf32, #tpu.memory_space<vmem>>, vector<64x64xf32>
    %9 = arith.truncf %8 : vector<64x64xf32> to vector<64x64xbf16>
    %c88 = arith.constant 88 : index
    %c0_7 = arith.constant 0 : index
    %10 = vector.load %arg3[%c88, %c0_7] : memref<216x64xf32, #tpu.memory_space<vmem>>, vector<64x64xf32>
    %11 = arith.truncf %10 : vector<64x64xf32> to vector<64x64xbf16>
    %c152 = arith.constant 152 : index
    %c0_8 = arith.constant 0 : index
    %12 = vector.load %arg3[%c152, %c0_8] : memref<216x64xf32, #tpu.memory_space<vmem>>, vector<64x64xf32>
    %13 = arith.truncf %12 : vector<64x64xf32> to vector<64x64xbf16>
    %c0_9 = arith.constant 0 : index
    %c0_10 = arith.constant 0 : index
    %14 = vector.load %arg4[%c0_9, %c0_10] : memref<8x64xf32, #tpu.memory_space<vmem>>, vector<8x64xf32>
    %15 = vector.extract_strided_slice %14 {offsets = [0, 0], sizes = [1, 64], strides = [1, 1]} : vector<8x64xf32> to vector<1x64xf32>
    %16 = vector.extract_strided_slice %14 {offsets = [1, 0], sizes = [1, 64], strides = [1, 1]} : vector<8x64xf32> to vector<1x64xf32>
    %17 = vector.extract_strided_slice %14 {offsets = [2, 0], sizes = [1, 64], strides = [1, 1]} : vector<8x64xf32> to vector<1x64xf32>
    %18 = vector.extract_strided_slice %14 {offsets = [3, 0], sizes = [1, 64], strides = [1, 1]} : vector<8x64xf32> to vector<1x64xf32>
    %cst = arith.constant dense<0.000000e+00> : vector<8x64xf32>
    %19 = tpu.matmul %1, %5, %cst {dimension_numbers = #tpu.dot_dimension_numbers<[1], [0], [0], [1], [0, 0, 1, 1], [], []>} : vector<8x16xbf16>, vector<16x64xbf16>, vector<8x64xf32> -> vector<8x64xf32>
    %cst_11 = arith.constant dense<0.000000e+00> : vector<8x64xf32>
    %20 = tpu.matmul %3, %7, %cst_11 {dimension_numbers = #tpu.dot_dimension_numbers<[1], [0], [0], [1], [0, 0, 1, 1], [], []>} : vector<8x8xbf16>, vector<8x64xbf16>, vector<8x64xf32> -> vector<8x64xf32>
    %21 = arith.addf %19, %20 : vector<8x64xf32>
    %22 = vector.broadcast %15 : vector<1x64xf32> to vector<8x64xf32>
    %23 = arith.addf %21, %22 : vector<8x64xf32>
    %cst_12 = arith.constant 0.000000e+00 : f32
    %24 = vector.broadcast %cst_12 : f32 to vector<8x64xf32>
    %25 = arith.maximumf %23, %24 : vector<8x64xf32>
    %26 = arith.truncf %25 : vector<8x64xf32> to vector<8x64xbf16>
    %cst_13 = arith.constant dense<0.000000e+00> : vector<8x64xf32>
    %27 = tpu.matmul %26, %9, %cst_13 {dimension_numbers = #tpu.dot_dimension_numbers<[1], [0], [0], [1], [0, 0, 1, 1], [], []>} : vector<8x64xbf16>, vector<64x64xbf16>, vector<8x64xf32> -> vector<8x64xf32>
    %28 = vector.broadcast %16 : vector<1x64xf32> to vector<8x64xf32>
    %29 = arith.addf %27, %28 : vector<8x64xf32>
    %30 = vector.broadcast %18 : vector<1x64xf32> to vector<8x64xf32>
    %31 = arith.maximumf %29, %30 : vector<8x64xf32>
    %32 = arith.truncf %31 : vector<8x64xf32> to vector<8x64xbf16>
    %cst_14 = arith.constant dense<0.000000e+00> : vector<8x64xf32>
    %33 = tpu.matmul %32, %11, %cst_14 {dimension_numbers = #tpu.dot_dimension_numbers<[1], [0], [0], [1], [0, 0, 1, 1], [], []>} : vector<8x64xbf16>, vector<64x64xbf16>, vector<8x64xf32> -> vector<8x64xf32>
    %cst_15 = arith.constant 0.000000e+00 : f32
    %34 = vector.broadcast %cst_15 : f32 to vector<8x64xf32>
    %35 = arith.maximumf %33, %34 : vector<8x64xf32>
    %36 = arith.truncf %35 : vector<8x64xf32> to vector<8x64xbf16>
    %cst_16 = arith.constant dense<0.000000e+00> : vector<8x64xf32>
    %37 = tpu.matmul %36, %13, %cst_16 {dimension_numbers = #tpu.dot_dimension_numbers<[1], [0], [0], [1], [0, 0, 1, 1], [], []>} : vector<8x64xbf16>, vector<64x64xbf16>, vector<8x64xf32> -> vector<8x64xf32>
    %38 = vector.extract_strided_slice %37 {offsets = [0, 0], sizes = [8, 4], strides = [1, 1]} : vector<8x64xf32> to vector<8x4xf32>
    %39 = vector.extract_strided_slice %17 {offsets = [0, 0], sizes = [1, 4], strides = [1, 1]} : vector<1x64xf32> to vector<1x4xf32>
    %40 = vector.broadcast %39 : vector<1x4xf32> to vector<8x4xf32>
    %41 = arith.addf %38, %40 : vector<8x4xf32>
    %c0_17 = arith.constant 0 : index
    %c0_18 = arith.constant 0 : index
    %42 = vector.load %arg5[%c0_17, %c0_18] : memref<8x4xf32, #tpu.memory_space<vmem>>, vector<8x4xf32>
    tpu.vector_store %arg5[%c0_17, %c0_18], %41 {strides = array<i32>} : memref<8x4xf32, #tpu.memory_space<vmem>>, vector<8x4xf32>,
    return
  }
  func.func @transform_0(%arg0: i32) -> (i32, i32) {
    %c0_i32 = arith.constant 0 : i32
    %c0_i32_0 = arith.constant 0 : i32
    return %arg0, %c0_i32 : i32, i32
  }
  func.func @transform_1(%arg0: i32) -> (i32, i32) {
    %c0_i32 = arith.constant 0 : i32
    %c0_i32_0 = arith.constant 0 : i32
    return %arg0, %c0_i32 : i32, i32
  }
  func.func @transform_2(%arg0: i32) -> (i32, i32) {
    %c0_i32 = arith.constant 0 : i32
    %c0_i32_0 = arith.constant 0 : i32
    %c0_i32_1 = arith.constant 0 : i32
    return %c0_i32, %c0_i32_0 : i32, i32
  }
  func.func @transform_3(%arg0: i32) -> (i32, i32) {
    %c0_i32 = arith.constant 0 : i32
    %c0_i32_0 = arith.constant 0 : i32
    %c0_i32_1 = arith.constant 0 : i32
    return %c0_i32, %c0_i32_0 : i32, i32
  }
  func.func @transform_4(%arg0: i32) -> (i32, i32) {
    %c0_i32 = arith.constant 0 : i32
    %c0_i32_0 = arith.constant 0 : i32
    return %arg0, %c0_i32 : i32, i32
  }
}

</mosaic_0001>

<llo_original>
// kernel: embedding_net_forward.1
$region0: #{embedding_net_forward.1}
  #allocation0 [shape = 'u32[]', space=smem, size = 0x4, offset = 0x4, fixed_abs, tag = 'smem constant byte address 0x4 - core index']
  #allocation1 [shape = 'u32[144,128]{1,0:T(1,128)}', space=vmem, size = 0x12000, scoped, tag = 'internal scratch']
  %s0 = inlined_call_operand.vmem [shape: f32[16,16], index: 0, kind: input, shape index: {}]
  %s1 = inlined_call_operand.vmem [shape: f32[16,8], index: 1, kind: input, shape index: {}]
  %s2 = inlined_call_operand.vmem [shape: f32[216,64], index: 2, kind: input, shape index: {}]
  %s3 = inlined_call_operand.vmem [shape: f32[8,64], index: 3, kind: input, shape index: {}]
  %s4 = inlined_call_operand.vmem [shape: f32[16,4], index: 4, kind: output, shape index: {}]
  %s5 = sld [smem:[#allocation0]]
  $region49: #{embedding_net_forward.1} parent=0
    _
  %s7 = ssub.s32 1, %s5
  %s8 = scalar_select 0, %s7, %s5
  loop: start=0, step=1, limit=4
  $region2: #{embedding_net_forward.1} parent=0 // loop_pre_header
    _
  $region3: #{embedding_net_forward.1} parent=0 // loop_header
    %s10 = sphi 0, %s14
    %p11 = scmp.ge.s32.totalorder %s10, 4
    %s20 = sphi 0, %s22
    %s23 = sphi 0, %s20
    %s24 = sphi 0, %s23
    %s40 = sphi 0, %s24
    %s46 = sphi 0, %s48
    %s49 = sphi 0, %s46
    %s50 = sphi 0, %s49
    %s66 = sphi 0, %s50
    %s70 = sphi 0, %s70
    %s72 = sphi 0, %s70
    %s73 = sphi 0, %s72
    %s87 = sphi 0, %s73
    %s91 = sphi 0, %s91
    %s93 = sphi 0, %s91
    %s94 = sphi 0, %s93
    %s108 = sphi 0, %s94
    %s114 = sphi 0, %s116
    %s117 = sphi 0, %s114
    %s118 = sphi 0, %s117
    %s134 = sphi 0, %s118
  $region4: #{embedding_net_forward.1} parent=0 // loop_header_branch
    %13 = sbr.rel (%p11) target = $region8
  $region5: #{embedding_net_forward.1} parent=0 // loop_body
    %s15 = ssub.s32 %s10, 1
    %s16 = ssub.s32 %s10, 2
    %s17 = sadd.s32 %s10, 1
    %s18 = ssub.s32 %s10, %s17
    %p19 = scmp.eq.s32.totalorder %s18, 0
    %s21 = sadd.s32 %s20, 1
    %s22 = scalar_select %p19, %s20, %s21
    %p25 = pneg %p19
    %p26 = scmp.eq.s32.totalorder %s10, 1
    %p27 = por %p25, %p26
    %p28 = scmp.ne.s32.totalorder %s20, %s23
    %p29 = scmp.eq.s32.totalorder %s10, 0
    %p30 = por %p28, %p29
    %p31 = scmp.ne.s32.totalorder %s20, %s23
    %p32 = scmp.eq.s32.totalorder %s15, 1
    %p33 = por %p31, %p32
    %p34 = scmp.ne.s32.totalorder %s23, %s24
    %p35 = scmp.eq.s32.totalorder %s15, 0
    %p36 = por %p34, %p35
    %p37 = scmp.ne.s32.totalorder %s23, %s24
    %p38 = scmp.eq.s32.totalorder %s16, 1
    %p39 = por %p37, %p38
    %p41 = scmp.ne.s32.totalorder %s24, %s40
    %p42 = scmp.eq.s32.totalorder %s16, 0
    %p43 = por %p41, %p42
    %s44 = ssub.s32 %s10, %s17
    %p45 = scmp.eq.s32.totalorder %s44, 0
    %s47 = sadd.s32 %s46, 1
    %s48 = scalar_select %p45, %s46, %s47
    %p51 = pneg %p45
    %p52 = scmp.eq.s32.totalorder %s10, 1
    %p53 = por %p51, %p52
    %p54 = scmp.ne.s32.totalorder %s46, %s49
    %p55 = scmp.eq.s32.totalorder %s10, 0
    %p56 = por %p54, %p55
    %p57 = scmp.ne.s32.totalorder %s46, %s49
    %p58 = scmp.eq.s32.totalorder %s15, 1
    %p59 = por %p57, %p58
    %p60 = scmp.ne.s32.totalorder %s49, %s50
    %p61 = scmp.eq.s32.totalorder %s15, 0
    %p62 = por %p60, %p61
    %p63 = scmp.ne.s32.totalorder %s49, %s50
    %p64 = scmp.eq.s32.totalorder %s16, 1
    %p65 = por %p63, %p64
    %p67 = scmp.ne.s32.totalorder %s50, %s66
    %p68 = scmp.eq.s32.totalorder %s16, 0
    %p69 = por %p67, %p68
    %s71 = sadd.s32 %s70, 1
    %p74 = scmp.eq.s32.totalorder %s10, 1
    %p75 = scmp.ne.s32.totalorder %s70, %s72
    %p76 = scmp.eq.s32.totalorder %s10, 0
    %p77 = por %p75, %p76
    %p78 = scmp.ne.s32.totalorder %s70, %s72
    %p79 = scmp.eq.s32.totalorder %s15, 1
    %p80 = por %p78, %p79
    %p81 = scmp.ne.s32.totalorder %s72, %s73
    %p82 = scmp.eq.s32.totalorder %s15, 0
    %p83 = por %p81, %p82
    %p84 = scmp.ne.s32.totalorder %s72, %s73
    %p85 = scmp.eq.s32.totalorder %s16, 1
    %p86 = por %p84, %p85
    %p88 = scmp.ne.s32.totalorder %s73, %s87
    %p89 = scmp.eq.s32.totalorder %s16, 0
    %p90 = por %p88, %p89
    %s92 = sadd.s32 %s91, 1
    %p95 = scmp.eq.s32.totalorder %s10, 1
    %p96 = scmp.ne.s32.totalorder %s91, %s93
    %p97 = scmp.eq.s32.totalorder %s10, 0
    %p98 = por %p96, %p97
    %p99 = scmp.ne.s32.totalorder %s91, %s93
    %p100 = scmp.eq.s32.totalorder %s15, 1
    %p101 = por %p99, %p100
    %p102 = scmp.ne.s32.totalorder %s93, %s94
    %p103 = scmp.eq.s32.totalorder %s15, 0
    %p104 = por %p102, %p103
    %p105 = scmp.ne.s32.totalorder %s93, %s94
    %p106 = scmp.eq.s32.totalorder %s16, 1
    %p107 = por %p105, %p106
    %p109 = scmp.ne.s32.totalorder %s94, %s108
    %p110 = scmp.eq.s32.totalorder %s16, 0
    %p111 = por %p109, %p110
    %s112 = ssub.s32 %s10, %s17
    %p113 = scmp.eq.s32.totalorder %s112, 0
    %s115 = sadd.s32 %s114, 1
    %s116 = scalar_select %p113, %s114, %s115
    %p119 = pneg %p113
    %p120 = scmp.eq.s32.totalorder %s10, 1
    %p121 = por %p119, %p120
    %p122 = scmp.ne.s32.totalorder %s114, %s117
    %p123 = scmp.eq.s32.totalorder %s10, 0
    %p124 = por %p122, %p123
    %p125 = scmp.ne.s32.totalorder %s114, %s117
    %p126 = scmp.eq.s32.totalorder %s15, 1
    %p127 = por %p125, %p126
    %p128 = scmp.ne.s32.totalorder %s117, %s118
    %p129 = scmp.eq.s32.totalorder %s15, 0
    %p130 = por %p128, %p129
    %p131 = scmp.ne.s32.totalorder %s117, %s118
    %p132 = scmp.eq.s32.totalorder %s16, 1
    %p133 = por %p131, %p132
    %p135 = scmp.ne.s32.totalorder %s118, %s134
    %p136 = scmp.eq.s32.totalorder %s16, 0
    %p137 = por %p135, %p136
    %p138 = scmp.le.s32.totalorder 1, %s10
    %p139 = scmp.lt.s32.totalorder %s10, 3
    %p140 = pnand %p138, %p139
    %p141 = pneg %p140
    // Predicated region
    $region9: #{embedding_net_forward.1} parent=5 // pred_check
      _
    $region10: #{embedding_net_forward.1} parent=5 // pred_check_branch
      %143 = sbr.rel (%p140) target = $region12
    $region11: #{embedding_net_forward.1} parent=5 // pred_region
      %s144 = ssub.s32 %s10, 1
      // Predicated region
      $region13: #{embedding_net_forward.1} parent=11 // pred_check
        %p145 = pneg %p83
      $region14: #{embedding_net_forward.1} parent=11 // pred_check_branch
        %147 = sbr.rel (%p145) target = $region16
      $region15: #{embedding_net_forward.1} parent=11 // pred_region
        _
      $region16: #{embedding_net_forward.1} parent=11 // pred_fallthru
        _
      // Predicated region
      $region17: #{embedding_net_forward.1} parent=11 // pred_check
        %p148 = pneg %p104
      $region18: #{embedding_net_forward.1} parent=11 // pred_check_branch
        %150 = sbr.rel (%p148) target = $region20
      $region19: #{embedding_net_forward.1} parent=11 // pred_region
        _
      $region20: #{embedding_net_forward.1} parent=11 // pred_fallthru
        _
    $region12: #{embedding_net_forward.1} parent=5 // pred_fallthru
      _
    %p151 = scmp.lt.s32.totalorder %s10, 2
    // Predicated region
    $region21: #{embedding_net_forward.1} parent=5 // pred_check
      %p152 = pneg %p151
    $region22: #{embedding_net_forward.1} parent=5 // pred_check_branch
      %154 = sbr.rel (%p152) target = $region24
    $region23: #{embedding_net_forward.1} parent=5 // pred_region
      // Predicated region
      $region25: #{embedding_net_forward.1} parent=23 // pred_check
        %p155 = pneg %p30
      $region26: #{embedding_net_forward.1} parent=23 // pred_check_branch
        %157 = sbr.rel (%p155) target = $region28
      $region27: #{embedding_net_forward.1} parent=23 // pred_region
        %p158 = scmp.lt.s32.totalorder %s10, 1
        %s159 = scalar_select %p158, %s10, 1
        %s160 = smul.addr %s159, 8
        %s161 = scalar_lea.vmem %s0, %s160
      $region28: #{embedding_net_forward.1} parent=23 // pred_fallthru
        _
      // Predicated region
      $region29: #{embedding_net_forward.1} parent=23 // pred_check
        %p162 = pneg %p56
      $region30: #{embedding_net_forward.1} parent=23 // pred_check_branch
        %164 = sbr.rel (%p162) target = $region32
      $region31: #{embedding_net_forward.1} parent=23 // pred_region
        %p165 = scmp.lt.s32.totalorder %s10, 1
        %s166 = scalar_select %p165, %s10, 1
        %s167 = smul.addr %s166, 8
        %s168 = scalar_lea.vmem %s1, %s167
      $region32: #{embedding_net_forward.1} parent=23 // pred_fallthru
        _
    $region24: #{embedding_net_forward.1} parent=5 // pred_fallthru
      _
    %p169 = scmp.le.s32.totalorder 1, %s10
    %p170 = scmp.lt.s32.totalorder %s10, 3
    %p171 = pnand %p169, %p170
    %p172 = pneg %p171
    // Predicated region
    $region33: #{embedding_net_forward.1} parent=5 // pred_check
      _
    $region34: #{embedding_net_forward.1} parent=5 // pred_check_branch
      %174 = sbr.rel (%p171) target = $region36
    $region35: #{embedding_net_forward.1} parent=5 // pred_region
      %s175 = ssub.s32 %s10, 1
      %p176 = scmp.lt.s32.totalorder %s15, 1
      %s177 = scalar_select %p176, %s15, 1
      %s178 = smul.addr %s177, 8
      %s179 = scalar_lea.vmem %s0, %s178
      %p180 = pneg %p36
      %p181 = pneg %p33
      %p182 = scmp.lt.s32.totalorder %s15, 1
      %s183 = scalar_select %p182, %s15, 1
      %s184 = smul.addr %s183, 8
      %s185 = scalar_lea.vmem %s1, %s184
      %p186 = pneg %p62
      %p187 = pneg %p59
      %p188 = pneg %p83
      %p189 = pneg %p80
      %p190 = pneg %p104
      %p191 = pneg %p101
      %p192 = pneg %p130
      %p193 = pneg %p127
      %p194 = scmp.lt.s32.totalorder %s15, 1
      %s195 = scalar_select %p194, %s15, 1
      %s196 = smul.addr %s195, 8
      %s197 = scalar_lea.vmem %s4, %s196
      %p198 = scmp.lt.s32.totalorder %s15, 1
      %s199 = scalar_select %p198, %s15, 1
      %s200 = smul.addr %s199, 8
      %s201 = scalar_lea.vmem %s0, %s200
      %p202 = scmp.lt.s32.totalorder %s15, 1
      %s203 = scalar_select %p202, %s15, 1
      %s204 = smul.addr %s203, 8
      %s205 = scalar_lea.vmem %s1, %s204
      %p206 = scmp.lt.s32.totalorder %s15, 1
      %s207 = scalar_select %p206, %s15, 1
      %s208 = smul.addr %s207, 8
      %s209 = scalar_lea.vmem %s4, %s208
      %v211 = vld [vmem:[%s201] sm:$0xff]
      %v212 = vpack.c.bf16 %v211, %v211
      %v213 = vld [vmem:[%s205] sm:$0xff]
      %v214 = vpack.c.bf16 %v213, %v213
      %v215 = vld [vmem:[%s2] sm:$0xff]
      %v216 = vld [vmem:[%s2 + $0x8] sm:$0xff]
      %v217 = vpack.c.bf16 %v216, %v215
      %v218 = vld [vmem:[%s2 + $0x10] sm:$0xff]
      %v219 = vpack.c.bf16 %v218, %v218
      %v220 = vld [vmem:[%s2 + $0x18] sm:$0xff]
      %v221 = vld [vmem:[%s2 + $0x20] sm:$0xff]
      %v222 = vld [vmem:[%s2 + $0x28] sm:$0xff]
      %v223 = vld [vmem:[%s2 + $0x30] sm:$0xff]
      %v224 = vld [vmem:[%s2 + $0x38] sm:$0xff]
      %v225 = vld [vmem:[%s2 + $0x40] sm:$0xff]
      %v226 = vld [vmem:[%s2 + $0x48] sm:$0xff]
      %v227 = vld [vmem:[%s2 + $0x50] sm:$0xff]
      %v228 = vpack.c.bf16 %v221, %v220
      %v229 = vpack.c.bf16 %v223, %v222
      %v230 = vpack.c.bf16 %v225, %v224
      %v231 = vpack.c.bf16 %v227, %v226
      %v232 = vld [vmem:[%s2 + $0x58] sm:$0xff]
      %v233 = vld [vmem:[%s2 + $0x60] sm:$0xff]
      %v234 = vld [vmem:[%s2 + $0x68] sm:$0xff]
      %v235 = vld [vmem:[%s2 + $0x70] sm:$0xff]
      %v236 = vld [vmem:[%s2 + $0x78] sm:$0xff]
      %v237 = vld [vmem:[%s2 + $0x80] sm:$0xff]
      %v238 = vld [vmem:[%s2 + $0x88] sm:$0xff]
      %v239 = vld [vmem:[%s2 + $0x90] sm:$0xff]
      %v240 = vpack.c.bf16 %v233, %v232
      %v241 = vpack.c.bf16 %v235, %v234
      %v242 = vpack.c.bf16 %v237, %v236
      %v243 = vpack.c.bf16 %v239, %v238
      %v244 = vld [vmem:[%s2 + $0x98] sm:$0xff]
      %v245 = vld [vmem:[%s2 + $0xa0] sm:$0xff]
      %v246 = vld [vmem:[%s2 + $0xa8] sm:$0xff]
      %v247 = vld [vmem:[%s2 + $0xb0] sm:$0xff]
      %v248 = vld [vmem:[%s2 + $0xb8] sm:$0xff]
      %v249 = vld [vmem:[%s2 + $0xc0] sm:$0xff]
      %v250 = vld [vmem:[%s2 + $0xc8] sm:$0xff]
      %v251 = vld [vmem:[%s2 + $0xd0] sm:$0xff]
      %v252 = vpack.c.bf16 %v245, %v244
      %v253 = vpack.c.bf16 %v247, %v246
      %v254 = vpack.c.bf16 %v249, %v248
      %v255 = vpack.c.bf16 %v251, %v250
      %v256 = vld [vmem:[%s3] sm:$0xff]
      %vm257 = vcmask 64512
      %v259 = vsel %vm257, %v214, 0
      %vm261 = vcmask 1043456
      %v263 = vsel %vm261, %v219, 0
      %265 = vmatprep.subr.bf16.mxu0 0
      %266 = vmatpush1.bf16.msra.mxu0 %v263
      %267 = vmatprep.subr.bf16.mxu0 0
      %268 = vmatpush1.bf16.msra.mxu0 0
      %269 = vmatprep.subr.bf16.mxu0 0
      %270 = vmatpush1.bf16.msra.mxu0 0
      %271 = vmatprep.subr.bf16.mxu0 0
      %272 = vmatpush1.bf16.msra.mxu0 0
      %273 = vmatprep.subr.bf16.mxu0 0
      %274 = vmatpush1.bf16.msra.mxu0 0
      %275 = vmatprep.subr.bf16.mxu0 0
      %276 = vmatpush1.bf16.msra.mxu0 0
      %277 = vmatprep.subr.bf16.mxu0 0
      %278 = vmatpush1.bf16.msra.mxu0 0
      %279 = vmatprep.subr.bf16.mxu0 0
      %280 = vmatpush1.bf16.msra.mxu0 0
      %281 = vmatprep.subr.bf16.mxu0 0
      %282 = vmatpush1.bf16.msra.mxu0 0
      %283 = vmatprep.subr.bf16.mxu0 0
      %284 = vmatpush1.bf16.msra.mxu0 0
      %285 = vmatprep.subr.bf16.mxu0 0
      %286 = vmatpush1.bf16.msra.mxu0 0
      %287 = vmatprep.subr.bf16.mxu0 0
      %288 = vmatpush1.bf16.msra.mxu0 0
      %289 = vmatprep.subr.bf16.mxu0 0
      %290 = vmatpush1.bf16.msra.mxu0 0
      %291 = vmatprep.subr.bf16.mxu0 0
      %292 = vmatpush1.bf16.msra.mxu0 0
      %293 = vmatprep.subr.bf16.mxu0 0
      %294 = vmatpush1.bf16.msra.mxu0 0
      %295 = vmatprep.subr.bf16.mxu0 0
      %296 = vmatpush1.bf16.msra.mxu0 0
      %297 = vmatprep.mubr.bf16.mxu0 0
      %298 = vmatmul.mubr.bf16.gmra.mrb[0].mxu0 %v259
      %v299 = vpop.f32.mrb[0].mxu0
      %v300 = vadd.f32 0.0, %v299
      %v301 = vpop.f32.mrb[0].mxu0
      %v302 = vpop.f32.mrb[0].mxu0
      %v303 = vpop.f32.mrb[0].mxu0
      %304 = vdwg.mxu0
      %vm305 = vcmask 130048
      %v307 = vsel %vm305, %v212, 0
      %309 = vmatprep.subr.bf16.mxu0 0
      %310 = vmatpush1.bf16.msra.mxu0 %v217
      %311 = vmatprep.subr.bf16.mxu0 0
      %312 = vmatpush1.bf16.msra.mxu0 0
      %313 = vmatprep.subr.bf16.mxu0 0
      %314 = vmatpush1.bf16.msra.mxu0 0
      %315 = vmatprep.subr.bf16.mxu0 0
      %316 = vmatpush1.bf16.msra.mxu0 0
      %317 = vmatprep.subr.bf16.mxu0 0
      %318 = vmatpush1.bf16.msra.mxu0 0
      %319 = vmatprep.subr.bf16.mxu0 0
      %320 = vmatpush1.bf16.msra.mxu0 0
      %321 = vmatprep.subr.bf16.mxu0 0
      %322 = vmatpush1.bf16.msra.mxu0 0
      %323 = vmatprep.subr.bf16.mxu0 0
      %324 = vmatpush1.bf16.msra.mxu0 0
      %325 = vmatprep.subr.bf16.mxu0 0
      %326 = vmatpush1.bf16.msra.mxu0 0
      %327 = vmatprep.subr.bf16.mxu0 0
      %328 = vmatpush1.bf16.msra.mxu0 0
      %329 = vmatprep.subr.bf16.mxu0 0
      %330 = vmatpush1.bf16.msra.mxu0 0
      %331 = vmatprep.subr.bf16.mxu0 0
      %332 = vmatpush1.bf16.msra.mxu0 0
      %333 = vmatprep.subr.bf16.mxu0 0
      %334 = vmatpush1.bf16.msra.mxu0 0
      %335 = vmatprep.subr.bf16.mxu0 0
      %336 = vmatpush1.bf16.msra.mxu0 0
      %337 = vmatprep.subr.bf16.mxu0 0
      %338 = vmatpush1.bf16.msra.mxu0 0
      %339 = vmatprep.subr.bf16.mxu0 0
      %340 = vmatpush1.bf16.msra.mxu0 0
      %341 = vmatprep.mubr.bf16.mxu0 0
      %342 = vmatmul.mubr.bf16.gmra.mrb[0].mxu0 %v307
      %v343 = vpop.f32.mrb[0].mxu0
      %v344 = vadd.f32 %v300, %v343
      %v345 = vpop.f32.mrb[0].mxu0
      %v346 = vpop.f32.mrb[0].mxu0
      %v347 = vpop.f32.mrb[0].mxu0
      %348 = vdwg.mxu0
      %v349 = vlaneseq
      %v350 = vshrl.u32 %v349, 7
      %v351 = vsub.s32 0, %v350
      %v352 = vrot.slane %v256, %v351
      %v353 = vadd.f32 %v344, %v352
      %v354 = vmax.f32 %v353, 0.0
      %v355 = vpack.c.bf16 %v354, %v354
      %v356 = vlaneseq
      %v357 = vshrl.u32 %v356, 7
      %v358 = vsub.s32 1, %v357
      %v359 = vrot.slane %v256, %v358
      %vm360 = vcmask 523264
      %v362 = vsel %vm360, %v355, 0
      %364 = vmatprep.subr.bf16.mxu0 0
      %365 = vmatpush1.bf16.msra.mxu0 %v228
      %366 = vmatprep.subr.bf16.mxu0 0
      %367 = vmatpush1.bf16.msra.mxu0 %v229
      %368 = vmatprep.subr.bf16.mxu0 0
      %369 = vmatpush1.bf16.msra.mxu0 %v230
      %370 = vmatprep.subr.bf16.mxu0 0
      %371 = vmatpush1.bf16.msra.mxu0 %v231
      %372 = vmatprep.subr.bf16.mxu0 0
      %373 = vmatpush1.bf16.msra.mxu0 0
      %374 = vmatprep.subr.bf16.mxu0 0
      %375 = vmatpush1.bf16.msra.mxu0 0
      %376 = vmatprep.subr.bf16.mxu0 0
      %377 = vmatpush1.bf16.msra.mxu0 0
      %378 = vmatprep.subr.bf16.mxu0 0
      %379 = vmatpush1.bf16.msra.mxu0 0
      %380 = vmatprep.subr.bf16.mxu0 0
      %381 = vmatpush1.bf16.msra.mxu0 0
      %382 = vmatprep.subr.bf16.mxu0 0
      %383 = vmatpush1.bf16.msra.mxu0 0
      %384 = vmatprep.subr.bf16.mxu0 0
      %385 = vmatpush1.bf16.msra.mxu0 0
      %386 = vmatprep.subr.bf16.mxu0 0
      %387 = vmatpush1.bf16.msra.mxu0 0
      %388 = vmatprep.subr.bf16.mxu0 0
      %389 = vmatpush1.bf16.msra.mxu0 0
      %390 = vmatprep.subr.bf16.mxu0 0
      %391 = vmatpush1.bf16.msra.mxu0 0
      %392 = vmatprep.subr.bf16.mxu0 0
      %393 = vmatpush1.bf16.msra.mxu0 0
      %394 = vmatprep.subr.bf16.mxu0 0
      %395 = vmatpush1.bf16.msra.mxu0 0
      %396 = vmatprep.mubr.bf16.mxu0 0
      %397 = vmatmul.mubr.bf16.gmra.mrb[0].mxu0 %v362
      %v398 = vpop.f32.mrb[0].mxu0
      %v399 = vadd.f32 %v359, %v398
      %v400 = vpop.f32.mrb[0].mxu0
      %v401 = vpop.f32.mrb[0].mxu0
      %v402 = vpop.f32.mrb[0].mxu0
      %403 = vdwg.mxu0
      %v404 = vlaneseq
      %v405 = vshrl.u32 %v404, 7
      %v406 = vsub.s32 3, %v405
      %v407 = vrot.slane %v256, %v406
      %v408 = vmax.f32 %v399, %v407
      %v409 = vpack.c.bf16 %v408, %v408
      %v411 = vsel %vm360, %v409, 0
      %413 = vmatprep.subr.bf16.mxu0 0
      %414 = vmatpush1.bf16.msra.mxu0 %v240
      %415 = vmatprep.subr.bf16.mxu0 0
      %416 = vmatpush1.bf16.msra.mxu0 %v241
      %417 = vmatprep.subr.bf16.mxu0 0
      %418 = vmatpush1.bf16.msra.mxu0 %v242
      %419 = vmatprep.subr.bf16.mxu0 0
      %420 = vmatpush1.bf16.msra.mxu0 %v243
      %421 = vmatprep.subr.bf16.mxu0 0
      %422 = vmatpush1.bf16.msra.mxu0 0
      %423 = vmatprep.subr.bf16.mxu0 0
      %424 = vmatpush1.bf16.msra.mxu0 0
      %425 = vmatprep.subr.bf16.mxu0 0
      %426 = vmatpush1.bf16.msra.mxu0 0
      %427 = vmatprep.subr.bf16.mxu0 0
      %428 = vmatpush1.bf16.msra.mxu0 0
      %429 = vmatprep.subr.bf16.mxu0 0
      %430 = vmatpush1.bf16.msra.mxu0 0
      %431 = vmatprep.subr.bf16.mxu0 0
      %432 = vmatpush1.bf16.msra.mxu0 0
      %433 = vmatprep.subr.bf16.mxu0 0
      %434 = vmatpush1.bf16.msra.mxu0 0
      %435 = vmatprep.subr.bf16.mxu0 0
      %436 = vmatpush1.bf16.msra.mxu0 0
      %437 = vmatprep.subr.bf16.mxu0 0
      %438 = vmatpush1.bf16.msra.mxu0 0
      %439 = vmatprep.subr.bf16.mxu0 0
      %440 = vmatpush1.bf16.msra.mxu0 0
      %441 = vmatprep.subr.bf16.mxu0 0
      %442 = vmatpush1.bf16.msra.mxu0 0
      %443 = vmatprep.subr.bf16.mxu0 0
      %444 = vmatpush1.bf16.msra.mxu0 0
      %445 = vmatprep.mubr.bf16.mxu0 0
      %446 = vmatmul.mubr.bf16.gmra.mrb[0].mxu0 %v411
      %v447 = vpop.f32.mrb[0].mxu0
      %v448 = vadd.f32 0.0, %v447
      %v449 = vpop.f32.mrb[0].mxu0
      %v450 = vpop.f32.mrb[0].mxu0
      %v451 = vpop.f32.mrb[0].mxu0
      %452 = vdwg.mxu0
      %v453 = vmax.f32 %v448, 0.0
      %v454 = vpack.c.bf16 %v453, %v453
      %v456 = vsel %vm360, %v454, 0
      %458 = vmatprep.subr.bf16.mxu0 0
      %459 = vmatpush1.bf16.msra.mxu0 %v252
      %460 = vmatprep.subr.bf16.mxu0 0
      %461 = vmatpush1.bf16.msra.mxu0 %v253
      %462 = vmatprep.subr.bf16.mxu0 0
      %463 = vmatpush1.bf16.msra.mxu0 %v254
      %464 = vmatprep.subr.bf16.mxu0 0
      %465 = vmatpush1.bf16.msra.mxu0 %v255
      %466 = vmatprep.subr.bf16.mxu0 0
      %467 = vmatpush1.bf16.msra.mxu0 0
      %468 = vmatprep.subr.bf16.mxu0 0
      %469 = vmatpush1.bf16.msra.mxu0 0
      %470 = vmatprep.subr.bf16.mxu0 0
      %471 = vmatpush1.bf16.msra.mxu0 0
      %472 = vmatprep.subr.bf16.mxu0 0
      %473 = vmatpush1.bf16.msra.mxu0 0
      %474 = vmatprep.subr.bf16.mxu0 0
      %475 = vmatpush1.bf16.msra.mxu0 0
      %476 = vmatprep.subr.bf16.mxu0 0
      %477 = vmatpush1.bf16.msra.mxu0 0
      %478 = vmatprep.subr.bf16.mxu0 0
      %479 = vmatpush1.bf16.msra.mxu0 0
      %480 = vmatprep.subr.bf16.mxu0 0
      %481 = vmatpush1.bf16.msra.mxu0 0
      %482 = vmatprep.subr.bf16.mxu0 0
      %483 = vmatpush1.bf16.msra.mxu0 0
      %484 = vmatprep.subr.bf16.mxu0 0
      %485 = vmatpush1.bf16.msra.mxu0 0
      %486 = vmatprep.subr.bf16.mxu0 0
      %487 = vmatpush1.bf16.msra.mxu0 0
      %488 = vmatprep.subr.bf16.mxu0 0
      %489 = vmatpush1.bf16.msra.mxu0 0
      %490 = vmatprep.mubr.bf16.mxu0 0
      %491 = vmatmul.mubr.bf16.gmra.mrb[0].mxu0 %v456
      %v492 = vpop.f32.mrb[0].mxu0
      %v493 = vadd.f32 0.0, %v492
      %v494 = vpop.f32.mrb[0].mxu0
      %v495 = vpop.f32.mrb[0].mxu0
      %v496 = vpop.f32.mrb[0].mxu0
      %497 = vdwg.mxu0
      %v498 = vlaneseq
      %v499 = vshrl.u32 %v498, 7
      %v500 = vsub.s32 2, %v499
      %v501 = vrot.slane %v256, %v500
      %v502 = vadd.f32 %v493, %v501
      %vm503 = vcmask 31744
      %504 = vst.msk [vmem:[%s209] sm:$0xff] %vm503, %v502
      %p505 = scmp.lt.s32.totalorder %s15, 1
      %s506 = scalar_select %p505, %s15, 1
      %s507 = smul.addr %s506, 8
      %s508 = scalar_lea.vmem %s4, %s507
      // Predicated region
      $region37: #{embedding_net_forward.1} parent=35 // pred_check
        %p509 = pneg %p127
      $region38: #{embedding_net_forward.1} parent=35 // pred_check_branch
        %511 = sbr.rel (%p509) target = $region40
      $region39: #{embedding_net_forward.1} parent=35 // pred_region
        _
      $region40: #{embedding_net_forward.1} parent=35 // pred_fallthru
        _
    $region36: #{embedding_net_forward.1} parent=5 // pred_fallthru
      _
    %p512 = scmp.le.s32.totalorder 2, %s10
    // Predicated region
    $region41: #{embedding_net_forward.1} parent=5 // pred_check
      %p513 = pneg %p512
    $region42: #{embedding_net_forward.1} parent=5 // pred_check_branch
      %515 = sbr.rel (%p513) target = $region44
    $region43: #{embedding_net_forward.1} parent=5 // pred_region
      %s516 = ssub.s32 %s10, 2
      // Predicated region
      $region45: #{embedding_net_forward.1} parent=43 // pred_check
        %p517 = pneg %p133
      $region46: #{embedding_net_forward.1} parent=43 // pred_check_branch
        %519 = sbr.rel (%p517) target = $region48
      $region47: #{embedding_net_forward.1} parent=43 // pred_region
        %p520 = scmp.lt.s32.totalorder %s16, 1
        %s521 = scalar_select %p520, %s16, 1
        %s522 = smul.addr %s521, 8
        %s523 = scalar_lea.vmem %s4, %s522
      $region48: #{embedding_net_forward.1} parent=43 // pred_fallthru
        _
    $region44: #{embedding_net_forward.1} parent=5 // pred_fallthru
      _
  $region6: #{embedding_net_forward.1} parent=0 // loop_footer
    %s14 = sadd.s32 1, %s10
  $region7: #{embedding_net_forward.1} parent=0 // loop_footer_branch
    %9 = sbr.rel target = $region3
  $region8: #{embedding_net_forward.1} parent=0 // loop_exit
    _

</llo_original>
